<compile_context>
chip_gen: v7x
topology: tpu7x:2x2x1
jax: 0.10.0
libtpu: 0.0.40
codegen_flags: <defaults>
</compile_context>

<pallas_src>
import jax
import jax.numpy as jnp
from jax import lax
from jax.experimental import pallas as pl
from jax.experimental.pallas import tpu as pltpu


def _residual_block_kernel(x_ref, m1_ref, b1_ref, m2_ref, b2_ref, out_ref,
                           pad_ref):
    # x_ref  : (1, H, W*C)       input image, channels innermost (lane-dense)
    # m*_ref : (3, W*C, W*C)     banded conv weights for dy = 0, 1, 2
    # b*_ref : (1, W*C)          bias tiled across W
    # out_ref: (1, H, W*C)
    # pad_ref: (H + 16, W*C)     f32 scratch; interior rows [8, 8+H), zero halo
    #                            at rows 7 and 8+H (8-aligned interior start)
    H = x_ref.shape[1]
    WC = x_ref.shape[2]
    ROW0 = 8  # sublane-aligned interior offset

    x = x_ref[0].astype(jnp.float32)  # (H, WC)

    # Zero only the two halo rows (the interior is fully overwritten below).
    # Done every step (not pl.when(pid==0)) so it stays correct if the
    # "parallel" grid axis is sharded across TensorCores.
    zrow = jnp.zeros((1, WC), jnp.float32)
    pad_ref[ROW0 - 1:ROW0, :] = zrow
    pad_ref[ROW0 + H:ROW0 + H + 1, :] = zrow

    def conv3x3(v, m_ref, b_ref):
        # v: (H, WC) f32.  Returns conv3x3(v) + b as (H, WC) f32.
        pad_ref[ROW0:ROW0 + H, :] = v                     # aligned full-width store
        up = pad_ref[ROW0 - 1:ROW0 - 1 + H, :]            # rows h-1 (zero at h=0)
        dn = pad_ref[ROW0 + 1:ROW0 + 1 + H, :]            # rows h+1 (zero at h=H-1)
        acc = jnp.dot(up, m_ref[0], preferred_element_type=jnp.float32)
        acc = acc + jnp.dot(v, m_ref[1], preferred_element_type=jnp.float32)
        acc = acc + jnp.dot(dn, m_ref[2], preferred_element_type=jnp.float32)
        return acc + b_ref[...]

    h1 = jnp.maximum(conv3x3(x, m1_ref, b1_ref), 0.0)     # conv1 + ReLU
    h2 = conv3x3(h1, m2_ref, b2_ref)                      # conv2
    out_ref[0] = jnp.maximum(h2 + x, 0.0).astype(out_ref.dtype)


def _banded_weights(w, width):
    """(3, 3, Cin, Cout) HWIO conv taps -> (3, W*Cin, W*Cout) banded matrices.

    M[dy][wi*Cin + ci, wo*Cout + co] = w[dy, wi - wo + 1, ci, co]  (else 0),
    so that conv row h = sum_dy x_row[h + dy - 1] @ M[dy]; the band structure
    implements both the dx taps and zero padding along W.
    """
    mats = []
    for dy in range(3):
        m = jnp.zeros((width * w.shape[2], width * w.shape[3]), w.dtype)
        for dx in range(3):
            m = m + jnp.kron(jnp.eye(width, k=1 - dx, dtype=w.dtype), w[dy, dx])
        mats.append(m)
    return jnp.stack(mats)  # (3, W*C, W*C)


def residual_block(x_nchw, w1, b1, w2, b2):
    """x_nchw: (N, C, H, W) float32.  w*: (3, 3, C, C) HWIO, b*: (C,)."""
    N, C, H, W = x_nchw.shape
    WC = W * C

    # Single layout copy to the lane-dense working layout (N, H, W*C).
    # TODO(synk): accepting NHWC at the boundary would remove this copy pair.
    x_flat = jnp.transpose(x_nchw, (0, 2, 3, 1)).reshape(N, H, WC)

    m1 = _banded_weights(w1, W)           # (3, WC, WC)
    m2 = _banded_weights(w2, W)
    b1t = jnp.tile(b1, W).reshape(1, WC)  # bias tiled so b[w*C + c] == b[c]
    b2t = jnp.tile(b2, W).reshape(1, WC)

    out_flat = pl.pallas_call(
        _residual_block_kernel,
        out_shape=jax.ShapeDtypeStruct((N, H, WC), x_flat.dtype),
        grid=(N,),
        in_specs=[
            pl.BlockSpec((1, H, WC), lambda n: (n, 0, 0)),
            pl.BlockSpec((3, WC, WC), lambda n: (0, 0, 0)),
            pl.BlockSpec((1, WC), lambda n: (0, 0)),
            pl.BlockSpec((3, WC, WC), lambda n: (0, 0, 0)),
            pl.BlockSpec((1, WC), lambda n: (0, 0)),
        ],
        out_specs=pl.BlockSpec((1, H, WC), lambda n: (n, 0, 0)),
        scratch_shapes=[pltpu.VMEM((H + 16, WC), jnp.float32)],
        compiler_params=pltpu.CompilerParams(
            dimension_semantics=("parallel",)),
    )(x_flat, m1, b1t, m2, b2t)

    return jnp.transpose(out_flat.reshape(N, H, W, C), (0, 3, 1, 2))  # NCHW


def _reference(x_nchw, w1, b1, w2, b2):
    """Pure-JAX reference (NHWC conv) matching the PyTorch forward."""
    x = jnp.transpose(x_nchw, (0, 2, 3, 1))
    dn = ('NHWC', 'HWIO', 'NHWC')
    h = lax.conv_general_dilated(x, w1, (1, 1), 'SAME', dimension_numbers=dn) + b1
    h = jnp.maximum(h, 0.0)
    h = lax.conv_general_dilated(h, w2, (1, 1), 'SAME', dimension_numbers=dn) + b2
    out = jnp.maximum(h + x, 0.0)
    return jnp.transpose(out, (0, 3, 1, 2))


if __name__ == "__main__":
    # ResidualBlock requires in_channels == out_channels for the residual add.
    # C=8, W=16 -> W*C = 128, fully lane-dense working layout.
    N, C, H, W = 2, 8, 16, 16
    key = jax.random.PRNGKey(0)
    kx, kw1, kb1, kw2, kb2 = jax.random.split(key, 5)

    # Deterministic init mimicking PyTorch Conv2d default (uniform +/- 1/sqrt(fan_in)).
    fan_in = C * 3 * 3
    bound = 1.0 / (fan_in ** 0.5)
    x = jax.random.normal(kx, (N, C, H, W), jnp.float32)
    w1 = jax.random.uniform(kw1, (3, 3, C, C), jnp.float32, -bound, bound)
    b1 = jax.random.uniform(kb1, (C,), jnp.float32, -bound, bound)
    w2 = jax.random.uniform(kw2, (3, 3, C, C), jnp.float32, -bound, bound)
    b2 = jax.random.uniform(kb2, (C,), jnp.float32, -bound, bound)

    out = residual_block(x, w1, b1, w2, b2)
    out = jax.block_until_ready(out)

    ref = _reference(x, w1, b1, w2, b2)
    assert out.shape == (N, C, H, W)
    assert jnp.allclose(out, ref, atol=1e-4, rtol=1e-4), \
        f"max err {jnp.max(jnp.abs(out - ref))}"

    print("KERNEL_OK")
</pallas_src>

<mosaic_0001>
module attributes {stable_mosaic.version = 11 : i64} {
  func.func @_residual_block_kernel(%arg0: i32, %arg1: memref<1x16x128xf32, #tpu.memory_space<vmem>>, %arg2: memref<3x128x128xf32, #tpu.memory_space<vmem>>, %arg3: memref<1x128xf32, #tpu.memory_space<vmem>>, %arg4: memref<3x128x128xf32, #tpu.memory_space<vmem>>, %arg5: memref<1x128xf32, #tpu.memory_space<vmem>>, %arg6: memref<1x16x128xf32, #tpu.memory_space<vmem>>, %arg7: memref<32x128xf32, #tpu.memory_space<vmem>>) attributes {dimension_semantics = [#tpu.dimension_semantics<parallel>], iteration_bounds = array<i64: 2>, scalar_prefetch = 0 : i64, scratch_operands = 1 : i64, tpu.core_type = #tpu.core_type<tc>, window_params = [{transform_indices = @transform_0, window_bounds = array<i64: 1, 16, 128>}, {pipeline_mode = #tpu.pipeline_mode<synchronous>, transform_indices = @transform_1, window_bounds = array<i64: 3, 128, 128>}, {pipeline_mode = #tpu.pipeline_mode<synchronous>, transform_indices = @transform_2, window_bounds = array<i64: 1, 128>}, {pipeline_mode = #tpu.pipeline_mode<synchronous>, transform_indices = @transform_3, window_bounds = array<i64: 3, 128, 128>}, {pipeline_mode = #tpu.pipeline_mode<synchronous>, transform_indices = @transform_4, window_bounds = array<i64: 1, 128>}, {transform_indices = @transform_5, window_bounds = array<i64: 1, 16, 128>}]} {
    %c0 = arith.constant 0 : index
    %c0_0 = arith.constant 0 : index
    %c0_1 = arith.constant 0 : index
    %0 = vector.load %arg1[%c0, %c0_0, %c0_1] : memref<1x16x128xf32, #tpu.memory_space<vmem>>, vector<1x16x128xf32>
    %1 = vector.shape_cast %0 : vector<1x16x128xf32> to vector<16x128xf32>
    %cst = arith.constant 0.000000e+00 : f32
    %2 = vector.broadcast %cst : f32 to vector<1x128xf32>
    %c7 = arith.constant 7 : index
    %c0_2 = arith.constant 0 : index
    %3 = vector.load %arg7[%c7, %c0_2] : memref<32x128xf32, #tpu.memory_space<vmem>>, vector<1x128xf32>
    tpu.vector_store %arg7[%c7, %c0_2], %2 {strides = array<i32>} : memref<32x128xf32, #tpu.memory_space<vmem>>, vector<1x128xf32>,
    %c24 = arith.constant 24 : index
    %c0_3 = arith.constant 0 : index
    %4 = vector.load %arg7[%c24, %c0_3] : memref<32x128xf32, #tpu.memory_space<vmem>>, vector<1x128xf32>
    tpu.vector_store %arg7[%c24, %c0_3], %2 {strides = array<i32>} : memref<32x128xf32, #tpu.memory_space<vmem>>, vector<1x128xf32>,
    %c8 = arith.constant 8 : index
    %c0_4 = arith.constant 0 : index
    %5 = vector.load %arg7[%c8, %c0_4] : memref<32x128xf32, #tpu.memory_space<vmem>>, vector<16x128xf32>
    tpu.vector_store %arg7[%c8, %c0_4], %1 {strides = array<i32>} : memref<32x128xf32, #tpu.memory_space<vmem>>, vector<16x128xf32>,
    %c7_5 = arith.constant 7 : index
    %c0_6 = arith.constant 0 : index
    %6 = vector.load %arg7[%c7_5, %c0_6] : memref<32x128xf32, #tpu.memory_space<vmem>>, vector<16x128xf32>
    %c9 = arith.constant 9 : index
    %c0_7 = arith.constant 0 : index
    %7 = vector.load %arg7[%c9, %c0_7] : memref<32x128xf32, #tpu.memory_space<vmem>>, vector<16x128xf32>
    %c0_8 = arith.constant 0 : index
    %c0_9 = arith.constant 0 : index
    %c0_10 = arith.constant 0 : index
    %8 = vector.load %arg2[%c0_8, %c0_9, %c0_10] : memref<3x128x128xf32, #tpu.memory_space<vmem>>, vector<1x128x128xf32>
    %9 = vector.shape_cast %8 : vector<1x128x128xf32> to vector<128x128xf32>
    %cst_11 = arith.constant dense<0.000000e+00> : vector<16x128xf32>
    %10 = tpu.matmul %6, %9, %cst_11 {dimension_numbers = #tpu.dot_dimension_numbers<[1], [0], [0], [1], [0, 0, 1, 1], [], []>} : vector<16x128xf32>, vector<128x128xf32>, vector<16x128xf32> -> vector<16x128xf32>
    %c1 = arith.constant 1 : index
    %c0_12 = arith.constant 0 : index
    %c0_13 = arith.constant 0 : index
    %11 = vector.load %arg2[%c1, %c0_12, %c0_13] : memref<3x128x128xf32, #tpu.memory_space<vmem>>, vector<1x128x128xf32>
    %12 = vector.shape_cast %11 : vector<1x128x128xf32> to vector<128x128xf32>
    %cst_14 = arith.constant dense<0.000000e+00> : vector<16x128xf32>
    %13 = tpu.matmul %1, %12, %cst_14 {dimension_numbers = #tpu.dot_dimension_numbers<[1], [0], [0], [1], [0, 0, 1, 1], [], []>} : vector<16x128xf32>, vector<128x128xf32>, vector<16x128xf32> -> vector<16x128xf32>
    %14 = arith.addf %10, %13 : vector<16x128xf32>
    %c2 = arith.constant 2 : index
    %c0_15 = arith.constant 0 : index
    %c0_16 = arith.constant 0 : index
    %15 = vector.load %arg2[%c2, %c0_15, %c0_16] : memref<3x128x128xf32, #tpu.memory_space<vmem>>, vector<1x128x128xf32>
    %16 = vector.shape_cast %15 : vector<1x128x128xf32> to vector<128x128xf32>
    %cst_17 = arith.constant dense<0.000000e+00> : vector<16x128xf32>
    %17 = tpu.matmul %7, %16, %cst_17 {dimension_numbers = #tpu.dot_dimension_numbers<[1], [0], [0], [1], [0, 0, 1, 1], [], []>} : vector<16x128xf32>, vector<128x128xf32>, vector<16x128xf32> -> vector<16x128xf32>
    %18 = arith.addf %14, %17 : vector<16x128xf32>
    %c0_18 = arith.constant 0 : index
    %c0_19 = arith.constant 0 : index
    %19 = vector.load %arg3[%c0_18, %c0_19] : memref<1x128xf32, #tpu.memory_space<vmem>>, vector<1x128xf32>
    %20 = vector.broadcast %19 : vector<1x128xf32> to vector<16x128xf32>
    %21 = arith.addf %18, %20 : vector<16x128xf32>
    %cst_20 = arith.constant 0.000000e+00 : f32
    %22 = vector.broadcast %cst_20 : f32 to vector<16x128xf32>
    %23 = arith.maximumf %21, %22 : vector<16x128xf32>
    %c8_21 = arith.constant 8 : index
    %c0_22 = arith.constant 0 : index
    %24 = vector.load %arg7[%c8_21, %c0_22] : memref<32x128xf32, #tpu.memory_space<vmem>>, vector<16x128xf32>
    tpu.vector_store %arg7[%c8_21, %c0_22], %23 {strides = array<i32>} : memref<32x128xf32, #tpu.memory_space<vmem>>, vector<16x128xf32>,
    %c7_23 = arith.constant 7 : index
    %c0_24 = arith.constant 0 : index
    %25 = vector.load %arg7[%c7_23, %c0_24] : memref<32x128xf32, #tpu.memory_space<vmem>>, vector<16x128xf32>
    %c9_25 = arith.constant 9 : index
    %c0_26 = arith.constant 0 : index
    %26 = vector.load %arg7[%c9_25, %c0_26] : memref<32x128xf32, #tpu.memory_space<vmem>>, vector<16x128xf32>
    %c0_27 = arith.constant 0 : index
    %c0_28 = arith.constant 0 : index
    %c0_29 = arith.constant 0 : index
    %27 = vector.load %arg4[%c0_27, %c0_28, %c0_29] : memref<3x128x128xf32, #tpu.memory_space<vmem>>, vector<1x128x128xf32>
    %28 = vector.shape_cast %27 : vector<1x128x128xf32> to vector<128x128xf32>
    %cst_30 = arith.constant dense<0.000000e+00> : vector<16x128xf32>
    %29 = tpu.matmul %25, %28, %cst_30 {dimension_numbers = #tpu.dot_dimension_numbers<[1], [0], [0], [1], [0, 0, 1, 1], [], []>} : vector<16x128xf32>, vector<128x128xf32>, vector<16x128xf32> -> vector<16x128xf32>
    %c1_31 = arith.constant 1 : index
    %c0_32 = arith.constant 0 : index
    %c0_33 = arith.constant 0 : index
    %30 = vector.load %arg4[%c1_31, %c0_32, %c0_33] : memref<3x128x128xf32, #tpu.memory_space<vmem>>, vector<1x128x128xf32>
    %31 = vector.shape_cast %30 : vector<1x128x128xf32> to vector<128x128xf32>
    %cst_34 = arith.constant dense<0.000000e+00> : vector<16x128xf32>
    %32 = tpu.matmul %23, %31, %cst_34 {dimension_numbers = #tpu.dot_dimension_numbers<[1], [0], [0], [1], [0, 0, 1, 1], [], []>} : vector<16x128xf32>, vector<128x128xf32>, vector<16x128xf32> -> vector<16x128xf32>
    %33 = arith.addf %29, %32 : vector<16x128xf32>
    %c2_35 = arith.constant 2 : index
    %c0_36 = arith.constant 0 : index
    %c0_37 = arith.constant 0 : index
    %34 = vector.load %arg4[%c2_35, %c0_36, %c0_37] : memref<3x128x128xf32, #tpu.memory_space<vmem>>, vector<1x128x128xf32>
    %35 = vector.shape_cast %34 : vector<1x128x128xf32> to vector<128x128xf32>
    %cst_38 = arith.constant dense<0.000000e+00> : vector<16x128xf32>
    %36 = tpu.matmul %26, %35, %cst_38 {dimension_numbers = #tpu.dot_dimension_numbers<[1], [0], [0], [1], [0, 0, 1, 1], [], []>} : vector<16x128xf32>, vector<128x128xf32>, vector<16x128xf32> -> vector<16x128xf32>
    %37 = arith.addf %33, %36 : vector<16x128xf32>
    %c0_39 = arith.constant 0 : index
    %c0_40 = arith.constant 0 : index
    %38 = vector.load %arg5[%c0_39, %c0_40] : memref<1x128xf32, #tpu.memory_space<vmem>>, vector<1x128xf32>
    %39 = vector.broadcast %38 : vector<1x128xf32> to vector<16x128xf32>
    %40 = arith.addf %37, %39 : vector<16x128xf32>
    %41 = arith.addf %40, %1 : vector<16x128xf32>
    %cst_41 = arith.constant 0.000000e+00 : f32
    %42 = vector.broadcast %cst_41 : f32 to vector<16x128xf32>
    %43 = arith.maximumf %41, %42 : vector<16x128xf32>
    %c0_42 = arith.constant 0 : index
    %c0_43 = arith.constant 0 : index
    %c0_44 = arith.constant 0 : index
    %44 = vector.load %arg6[%c0_42, %c0_43, %c0_44] : memref<1x16x128xf32, #tpu.memory_space<vmem>>, vector<1x16x128xf32>
    %45 = vector.shape_cast %44 : vector<1x16x128xf32> to vector<16x128xf32>
    %46 = vector.shape_cast %43 : vector<16x128xf32> to vector<1x16x128xf32>
    tpu.vector_store %arg6[%c0_42, %c0_43, %c0_44], %46 {strides = array<i32>} : memref<1x16x128xf32, #tpu.memory_space<vmem>>, vector<1x16x128xf32>,
    return
  }
  func.func @transform_0(%arg0: i32) -> (i32, i32, i32) {
    %c0_i32 = arith.constant 0 : i32
    %c0_i32_0 = arith.constant 0 : i32
    %c0_i32_1 = arith.constant 0 : i32
    return %arg0, %c0_i32, %c0_i32_0 : i32, i32, i32
  }
  func.func @transform_1(%arg0: i32) -> (i32, i32, i32) {
    %c0_i32 = arith.constant 0 : i32
    %c0_i32_0 = arith.constant 0 : i32
    %c0_i32_1 = arith.constant 0 : i32
    %c0_i32_2 = arith.constant 0 : i32
    return %c0_i32, %c0_i32_0, %c0_i32_1 : i32, i32, i32
  }
  func.func @transform_2(%arg0: i32) -> (i32, i32) {
    %c0_i32 = arith.constant 0 : i32
    %c0_i32_0 = arith.constant 0 : i32
    %c0_i32_1 = arith.constant 0 : i32
    return %c0_i32, %c0_i32_0 : i32, i32
  }
  func.func @transform_3(%arg0: i32) -> (i32, i32, i32) {
    %c0_i32 = arith.constant 0 : i32
    %c0_i32_0 = arith.constant 0 : i32
    %c0_i32_1 = arith.constant 0 : i32
    %c0_i32_2 = arith.constant 0 : i32
    return %c0_i32, %c0_i32_0, %c0_i32_1 : i32, i32, i32
  }
  func.func @transform_4(%arg0: i32) -> (i32, i32) {
    %c0_i32 = arith.constant 0 : i32
    %c0_i32_0 = arith.constant 0 : i32
    %c0_i32_1 = arith.constant 0 : i32
    return %c0_i32, %c0_i32_0 : i32, i32
  }
  func.func @transform_5(%arg0: i32) -> (i32, i32, i32) {
    %c0_i32 = arith.constant 0 : i32
    %c0_i32_0 = arith.constant 0 : i32
    %c0_i32_1 = arith.constant 0 : i32
    return %arg0, %c0_i32, %c0_i32_0 : i32, i32, i32
  }
}

</mosaic_0001>

<llo_original>
// kernel: tpu_custom_call.1
$region0: #{tpu_custom_call.1}
  #allocation0 [shape = 'u32[]', space=smem, size = 0x4, offset = 0x4, fixed_abs, tag = 'smem constant byte address 0x4 - core index']
  #allocation1 [shape = 'u32[144,128]{1,0:T(1,128)}', space=vmem, size = 0x12000, scoped, tag = 'internal scratch']
  #allocation2 [shape = 'f32[32,128]{1,0:T(8,128)}', space=vmem, size = 0x4000, scoped, tag = 'scratch operand']
  %s0 = inlined_call_operand.hbm [shape: f32[2,16,128], index: 0, kind: input, shape index: {}]
  %s1 = inlined_call_operand.hbm [shape: f32[3,128,128], index: 1, kind: input, shape index: {}]
  %s2 = inlined_call_operand.vmem [shape: f32[1,128], index: 2, kind: input, shape index: {}]
  %s3 = inlined_call_operand.hbm [shape: f32[3,128,128], index: 3, kind: input, shape index: {}]
  %s4 = inlined_call_operand.vmem [shape: f32[1,128], index: 4, kind: input, shape index: {}]
  %s5 = inlined_call_operand.hbm [shape: f32[2,16,128], index: 5, kind: output, shape index: {}]
  %s6 = sld [smem:[#allocation0]]
  $region65: #{tpu_custom_call.1} parent=0
    _
  %s8 = ssub.s32 1, %s6
  %s9 = scalar_select 0, %s8, %s6
  $region1: #{tpu_custom_call.1} parent=0
    #allocation3 [shape = 'u8[16384]{0}', space=vmem, size = 0x4000, scoped, tag = 'input window, operand 0']
    #allocation4 [shape = 's32[2]{0}', space=sflag, size = 0x8, scoped, tag = 'scoped memory for tpu_custom_call.1']
    #allocation5 [shape = 's32[2]{0}', space=sflag, size = 0x8, scoped, tag = 'scoped memory for tpu_custom_call.1']
    #allocation6 [shape = 'u8[196608]{0}', space=vmem, size = 0x30000, scoped, tag = 'input window, operand 1, single buffered']
    #allocation7 [shape = 's32[1]{0}', space=sflag, size = 0x4, scoped, tag = 'scoped memory for tpu_custom_call.1']
    #allocation8 [shape = 'u8[196608]{0}', space=vmem, size = 0x30000, scoped, tag = 'input window, operand 3, single buffered']
    #allocation9 [shape = 'u8[16384]{0}', space=vmem, size = 0x4000, scoped, tag = 'output window, operand 0']
    %10 = vsyncpa [#allocation4], 0
    %s11 = scalar_lea.sflag [#allocation4], 1
    %12 = vsyncpa %s11, 0
    %13 = vsyncpa [#allocation7], 0
    %14 = vsyncpa [#allocation5], 0
    %s15 = scalar_lea.sflag [#allocation5], 1
    %16 = vsyncpa %s15, 0
    loop: start=0, step=1, limit=4
    $region2: #{tpu_custom_call.1} parent=1 // loop_pre_header
      _
    $region3: #{tpu_custom_call.1} parent=1 // loop_header
      %s18 = sphi 0, %s22
      %p19 = scmp.ge.s32.totalorder %s18, 4
      %s28 = sphi 0, %s30
      %s31 = sphi 0, %s28
      %s32 = sphi 0, %s31
      %s48 = sphi 0, %s32
      %s52 = sphi 0, %s52
      %s54 = sphi 0, %s52
      %s55 = sphi 0, %s54
      %s69 = sphi 0, %s55
      %s73 = sphi 0, %s73
      %s75 = sphi 0, %s73
      %s76 = sphi 0, %s75
      %s90 = sphi 0, %s76
      %s94 = sphi 0, %s94
      %s96 = sphi 0, %s94
      %s97 = sphi 0, %s96
      %s111 = sphi 0, %s97
      %s115 = sphi 0, %s115
      %s117 = sphi 0, %s115
      %s118 = sphi 0, %s117
      %s132 = sphi 0, %s118
      %s138 = sphi 0, %s140
      %s141 = sphi 0, %s138
      %s142 = sphi 0, %s141
      %s158 = sphi 0, %s142
    $region4: #{tpu_custom_call.1} parent=1 // loop_header_branch
      %21 = sbr.rel (%p19) target = $region8
    $region5: #{tpu_custom_call.1} parent=1 // loop_body
      %s23 = ssub.s32 %s18, 1
      %s24 = ssub.s32 %s18, 2
      %s25 = sadd.s32 %s18, 1
      %s26 = ssub.s32 %s18, %s25
      %p27 = scmp.eq.s32.totalorder %s26, 0
      %s29 = sadd.s32 %s28, 1
      %s30 = scalar_select %p27, %s28, %s29
      %p33 = pneg %p27
      %p34 = scmp.eq.s32.totalorder %s18, 1
      %p35 = por %p33, %p34
      %p36 = scmp.ne.s32.totalorder %s28, %s31
      %p37 = scmp.eq.s32.totalorder %s18, 0
      %p38 = por %p36, %p37
      %p39 = scmp.ne.s32.totalorder %s28, %s31
      %p40 = scmp.eq.s32.totalorder %s23, 1
      %p41 = por %p39, %p40
      %p42 = scmp.ne.s32.totalorder %s31, %s32
      %p43 = scmp.eq.s32.totalorder %s23, 0
      %p44 = por %p42, %p43
      %p45 = scmp.ne.s32.totalorder %s31, %s32
      %p46 = scmp.eq.s32.totalorder %s24, 1
      %p47 = por %p45, %p46
      %p49 = scmp.ne.s32.totalorder %s32, %s48
      %p50 = scmp.eq.s32.totalorder %s24, 0
      %p51 = por %p49, %p50
      %s53 = sadd.s32 %s52, 1
      %p56 = scmp.eq.s32.totalorder %s18, 1
      %p57 = scmp.ne.s32.totalorder %s52, %s54
      %p58 = scmp.eq.s32.totalorder %s18, 0
      %p59 = por %p57, %p58
      %p60 = scmp.ne.s32.totalorder %s52, %s54
      %p61 = scmp.eq.s32.totalorder %s23, 1
      %p62 = por %p60, %p61
      %p63 = scmp.ne.s32.totalorder %s54, %s55
      %p64 = scmp.eq.s32.totalorder %s23, 0
      %p65 = por %p63, %p64
      %p66 = scmp.ne.s32.totalorder %s54, %s55
      %p67 = scmp.eq.s32.totalorder %s24, 1
      %p68 = por %p66, %p67
      %p70 = scmp.ne.s32.totalorder %s55, %s69
      %p71 = scmp.eq.s32.totalorder %s24, 0
      %p72 = por %p70, %p71
      %s74 = sadd.s32 %s73, 1
      %p77 = scmp.eq.s32.totalorder %s18, 1
      %p78 = scmp.ne.s32.totalorder %s73, %s75
      %p79 = scmp.eq.s32.totalorder %s18, 0
      %p80 = por %p78, %p79
      %p81 = scmp.ne.s32.totalorder %s73, %s75
      %p82 = scmp.eq.s32.totalorder %s23, 1
      %p83 = por %p81, %p82
      %p84 = scmp.ne.s32.totalorder %s75, %s76
      %p85 = scmp.eq.s32.totalorder %s23, 0
      %p86 = por %p84, %p85
      %p87 = scmp.ne.s32.totalorder %s75, %s76
      %p88 = scmp.eq.s32.totalorder %s24, 1
      %p89 = por %p87, %p88
      %p91 = scmp.ne.s32.totalorder %s76, %s90
      %p92 = scmp.eq.s32.totalorder %s24, 0
      %p93 = por %p91, %p92
      %s95 = sadd.s32 %s94, 1
      %p98 = scmp.eq.s32.totalorder %s18, 1
      %p99 = scmp.ne.s32.totalorder %s94, %s96
      %p100 = scmp.eq.s32.totalorder %s18, 0
      %p101 = por %p99, %p100
      %p102 = scmp.ne.s32.totalorder %s94, %s96
      %p103 = scmp.eq.s32.totalorder %s23, 1
      %p104 = por %p102, %p103
      %p105 = scmp.ne.s32.totalorder %s96, %s97
      %p106 = scmp.eq.s32.totalorder %s23, 0
      %p107 = por %p105, %p106
      %p108 = scmp.ne.s32.totalorder %s96, %s97
      %p109 = scmp.eq.s32.totalorder %s24, 1
      %p110 = por %p108, %p109
      %p112 = scmp.ne.s32.totalorder %s97, %s111
      %p113 = scmp.eq.s32.totalorder %s24, 0
      %p114 = por %p112, %p113
      %s116 = sadd.s32 %s115, 1
      %p119 = scmp.eq.s32.totalorder %s18, 1
      %p120 = scmp.ne.s32.totalorder %s115, %s117
      %p121 = scmp.eq.s32.totalorder %s18, 0
      %p122 = por %p120, %p121
      %p123 = scmp.ne.s32.totalorder %s115, %s117
      %p124 = scmp.eq.s32.totalorder %s23, 1
      %p125 = por %p123, %p124
      %p126 = scmp.ne.s32.totalorder %s117, %s118
      %p127 = scmp.eq.s32.totalorder %s23, 0
      %p128 = por %p126, %p127
      %p129 = scmp.ne.s32.totalorder %s117, %s118
      %p130 = scmp.eq.s32.totalorder %s24, 1
      %p131 = por %p129, %p130
      %p133 = scmp.ne.s32.totalorder %s118, %s132
      %p134 = scmp.eq.s32.totalorder %s24, 0
      %p135 = por %p133, %p134
      %s136 = ssub.s32 %s18, %s25
      %p137 = scmp.eq.s32.totalorder %s136, 0
      %s139 = sadd.s32 %s138, 1
      %s140 = scalar_select %p137, %s138, %s139
      %p143 = pneg %p137
      %p144 = scmp.eq.s32.totalorder %s18, 1
      %p145 = por %p143, %p144
      %p146 = scmp.ne.s32.totalorder %s138, %s141
      %p147 = scmp.eq.s32.totalorder %s18, 0
      %p148 = por %p146, %p147
      %p149 = scmp.ne.s32.totalorder %s138, %s141
      %p150 = scmp.eq.s32.totalorder %s23, 1
      %p151 = por %p149, %p150
      %p152 = scmp.ne.s32.totalorder %s141, %s142
      %p153 = scmp.eq.s32.totalorder %s23, 0
      %p154 = por %p152, %p153
      %p155 = scmp.ne.s32.totalorder %s141, %s142
      %p156 = scmp.eq.s32.totalorder %s24, 1
      %p157 = por %p155, %p156
      %p159 = scmp.ne.s32.totalorder %s142, %s158
      %p160 = scmp.eq.s32.totalorder %s24, 0
      %p161 = por %p159, %p160
      %p162 = scmp.le.s32.totalorder 1, %s18
      %p163 = scmp.lt.s32.totalorder %s18, 3
      %p164 = pnand %p162, %p163
      %p165 = pneg %p164
      // Predicated region
      $region9: #{tpu_custom_call.1} parent=5 // pred_check
        _
      $region10: #{tpu_custom_call.1} parent=5 // pred_check_branch
        %167 = sbr.rel (%p164) target = $region12
      $region11: #{tpu_custom_call.1} parent=5 // pred_region
        %s168 = ssub.s32 %s18, 1
        // Predicated region
        $region13: #{tpu_custom_call.1} parent=11 // pred_check
          %p169 = pneg %p65
        $region14: #{tpu_custom_call.1} parent=11 // pred_check_branch
          %171 = sbr.rel (%p169) target = $region16
        $region15: #{tpu_custom_call.1} parent=11 // pred_region
          %s173 = ssub.s32 6144, 6144
          %174 = vsyncadd [#allocation7], %s173
          %s175 = sshll.u32 [#allocation6], 4
          %s176 = int_to_ptr.vmem [resolvable:$true] %s175
          %181 = dma.hbm_to_vmem [thread:$0]  %s1, 6144, %s176, [#allocation7], 128, 128, 8
        $region16: #{tpu_custom_call.1} parent=11 // pred_fallthru
          _
        // Predicated region
        $region17: #{tpu_custom_call.1} parent=11 // pred_check
          %p182 = pneg %p86
        $region18: #{tpu_custom_call.1} parent=11 // pred_check_branch
          %184 = sbr.rel (%p182) target = $region20
        $region19: #{tpu_custom_call.1} parent=11 // pred_region
          _
        $region20: #{tpu_custom_call.1} parent=11 // pred_fallthru
          _
        // Predicated region
        $region21: #{tpu_custom_call.1} parent=11 // pred_check
          %p185 = pneg %p107
        $region22: #{tpu_custom_call.1} parent=11 // pred_check_branch
          %187 = sbr.rel (%p185) target = $region24
        $region23: #{tpu_custom_call.1} parent=11 // pred_region
          %s189 = ssub.s32 6144, 6144
          %190 = vsyncadd [#allocation7], %s189
          %s191 = sshll.u32 [#allocation8], 4
          %s192 = int_to_ptr.vmem [resolvable:$true] %s191
          %197 = dma.hbm_to_vmem [thread:$0]  %s3, 6144, %s192, [#allocation7], 128, 128, 8
        $region24: #{tpu_custom_call.1} parent=11 // pred_fallthru
          _
        // Predicated region
        $region25: #{tpu_custom_call.1} parent=11 // pred_check
          %p198 = pneg %p128
        $region26: #{tpu_custom_call.1} parent=11 // pred_check_branch
          %200 = sbr.rel (%p198) target = $region28
        $region27: #{tpu_custom_call.1} parent=11 // pred_region
          _
        $region28: #{tpu_custom_call.1} parent=11 // pred_fallthru
          _
      $region12: #{tpu_custom_call.1} parent=5 // pred_fallthru
        _
      %p201 = scmp.lt.s32.totalorder %s18, 2
      // Predicated region
      $region29: #{tpu_custom_call.1} parent=5 // pred_check
        %p202 = pneg %p201
      $region30: #{tpu_custom_call.1} parent=5 // pred_check_branch
        %204 = sbr.rel (%p202) target = $region32
      $region31: #{tpu_custom_call.1} parent=5 // pred_region
        // Predicated region
        $region33: #{tpu_custom_call.1} parent=31 // pred_check
          %p205 = pneg %p38
        $region34: #{tpu_custom_call.1} parent=31 // pred_check_branch
          %207 = sbr.rel (%p205) target = $region36
        $region35: #{tpu_custom_call.1} parent=31 // pred_region
          %s208 = sand.u32 %s28, 1
          %s209 = scalar_lea.sflag [#allocation4], %s208
          %s210 = sand.u32 %s28, 1
          %s211 = smul.addr %s210, 16
          %s212 = scalar_lea.vmem [#allocation3], %s211
          %s214 = ssub.s32 256, 256
          %215 = vsyncadd %s209, %s214
          %s216 = smul.addr %s18, 2
          %s217 = smul.addr %s216, 128
          %s218 = scalar_lea.hbm %s0, %s217
          %s219 = sshll.u32 %s212, 4
          %s220 = int_to_ptr.vmem [resolvable:$true] %s219
          %225 = dma.hbm_to_vmem [thread:$0]  %s218, 256, %s220, %s209, 128, 128, 8
        $region36: #{tpu_custom_call.1} parent=31 // pred_fallthru
          _
      $region32: #{tpu_custom_call.1} parent=5 // pred_fallthru
        _
      %p226 = scmp.le.s32.totalorder 1, %s18
      %p227 = scmp.lt.s32.totalorder %s18, 3
      %p228 = pnand %p226, %p227
      %p229 = pneg %p228
      // Predicated region
      $region37: #{tpu_custom_call.1} parent=5 // pred_check
        _
      $region38: #{tpu_custom_call.1} parent=5 // pred_check_branch
        %231 = sbr.rel (%p228) target = $region40
      $region39: #{tpu_custom_call.1} parent=5 // pred_region
        %s232 = ssub.s32 %s18, 1
        %s233 = sand.u32 %s31, 1
        %s234 = scalar_lea.sflag [#allocation4], %s233
        %s235 = sand.u32 %s31, 1
        %s236 = smul.addr %s235, 16
        %s237 = scalar_lea.vmem [#allocation3], %s236
        // Predicated region
        $region41: #{tpu_custom_call.1} parent=39 // pred_check
          %p238 = pneg %p44
        $region42: #{tpu_custom_call.1} parent=39 // pred_check_branch
          %240 = sbr.rel (%p238) target = $region44
        $region43: #{tpu_custom_call.1} parent=39 // pred_region
          %241 = dma.done %s234, 256
        $region44: #{tpu_custom_call.1} parent=39 // pred_fallthru
          _
        // Predicated region
        $region45: #{tpu_custom_call.1} parent=39 // pred_check
          %p242 = pneg %p65
        $region46: #{tpu_custom_call.1} parent=39 // pred_check_branch
          %244 = sbr.rel (%p242) target = $region48
        $region47: #{tpu_custom_call.1} parent=39 // pred_region
          %245 = dma.done [#allocation7], 6144
        $region48: #{tpu_custom_call.1} parent=39 // pred_fallthru
          _
        // Predicated region
        $region49: #{tpu_custom_call.1} parent=39 // pred_check
          %p246 = pneg %p107
        $region50: #{tpu_custom_call.1} parent=39 // pred_check_branch
          %248 = sbr.rel (%p246) target = $region52
        $region51: #{tpu_custom_call.1} parent=39 // pred_region
          %249 = dma.done [#allocation7], 6144
        $region52: #{tpu_custom_call.1} parent=39 // pred_fallthru
          _
        %s250 = sand.u32 %s31, 1
        %s251 = scalar_lea.sflag [#allocation4], %s250
        %s252 = sand.u32 %s31, 1
        %s253 = smul.addr %s252, 16
        %s254 = scalar_lea.vmem [#allocation3], %s253
        %p255 = pneg %p44
        %p256 = pneg %p41
        %p257 = pneg %p65
        %p258 = pneg %p62
        %p259 = pneg %p86
        %p260 = pneg %p83
        %p261 = pneg %p107
        %p262 = pneg %p104
        %p263 = pneg %p128
        %p264 = pneg %p125
        %p265 = pneg %p154
        %p266 = pneg %p151
        %s267 = sand.u32 %s141, 1
        %s268 = scalar_lea.sflag [#allocation5], %s267
        %s269 = sand.u32 %s141, 1
        %s270 = smul.addr %s269, 16
        %s271 = scalar_lea.vmem [#allocation9], %s270
        %v272 = vld [vmem:[%s237] sm:$0xff]
        %v273 = vld [vmem:[%s237 + $0x8] sm:$0xff]
        %274 = vst [vmem:[#allocation2 + $0x7] sm:$0x1] 0.0
        %275 = vst [vmem:[#allocation2 + $0x18] sm:$0x1] 0.0
        %276 = vst [vmem:[#allocation2 + $0x8] sm:$0xff] %v272
        %277 = vst [vmem:[#allocation2 + $0x10] sm:$0xff] %v273
        %v278 = vld [vmem:[#allocation2 + $0x7] sm:$0xff]
        %v279 = vld [vmem:[#allocation2 + $0xf] sm:$0xff]
        %v280 = vld [vmem:[#allocation2 + $0x9] sm:$0xff]
        %v281 = vld [vmem:[#allocation2 + $0x11] sm:$0xff]
        %v282 = vld [vmem:[#allocation6] sm:$0xff]
        %v283 = vld [vmem:[#allocation6 + $0x8] sm:$0xff]
        %v284 = vld [vmem:[#allocation6 + $0x10] sm:$0xff]
        %v285 = vld [vmem:[#allocation6 + $0x18] sm:$0xff]
        %v286 = vld [vmem:[#allocation6 + $0x20] sm:$0xff]
        %v287 = vld [vmem:[#allocation6 + $0x28] sm:$0xff]
        %v288 = vld [vmem:[#allocation6 + $0x30] sm:$0xff]
        %v289 = vld [vmem:[#allocation6 + $0x38] sm:$0xff]
        %v290 = vld [vmem:[#allocation6 + $0x40] sm:$0xff]
        %v291 = vld [vmem:[#allocation6 + $0x48] sm:$0xff]
        %v292 = vld [vmem:[#allocation6 + $0x50] sm:$0xff]
        %v293 = vld [vmem:[#allocation6 + $0x58] sm:$0xff]
        %v294 = vld [vmem:[#allocation6 + $0x60] sm:$0xff]
        %v295 = vld [vmem:[#allocation6 + $0x68] sm:$0xff]
        %v296 = vld [vmem:[#allocation6 + $0x70] sm:$0xff]
        %v297 = vld [vmem:[#allocation6 + $0x78] sm:$0xff]
        %s298 = scalar_lea.vmem [#allocation6], 128
        %v299 = vld [vmem:[%s298] sm:$0xff]
        %v300 = vld [vmem:[%s298 + $0x8] sm:$0xff]
        %v301 = vld [vmem:[%s298 + $0x10] sm:$0xff]
        %v302 = vld [vmem:[%s298 + $0x18] sm:$0xff]
        %v303 = vld [vmem:[%s298 + $0x20] sm:$0xff]
        %v304 = vld [vmem:[%s298 + $0x28] sm:$0xff]
        %v305 = vld [vmem:[%s298 + $0x30] sm:$0xff]
        %v306 = vld [vmem:[%s298 + $0x38] sm:$0xff]
        %v307 = vld [vmem:[%s298 + $0x40] sm:$0xff]
        %v308 = vld [vmem:[%s298 + $0x48] sm:$0xff]
        %v309 = vld [vmem:[%s298 + $0x50] sm:$0xff]
        %v310 = vld [vmem:[%s298 + $0x58] sm:$0xff]
        %v311 = vld [vmem:[%s298 + $0x60] sm:$0xff]
        %v312 = vld [vmem:[%s298 + $0x68] sm:$0xff]
        %v313 = vld [vmem:[%s298 + $0x70] sm:$0xff]
        %v314 = vld [vmem:[%s298 + $0x78] sm:$0xff]
        %315 = vmatprep.subr.mxu0 0.0
        %316 = vmatpush1.msra.mxu0 %v299
        %317 = vmatprep.subr.mxu0 0.0
        %318 = vmatpush1.msra.mxu0 %v300
        %319 = vmatprep.subr.mxu0 0.0
        %320 = vmatpush1.msra.mxu0 %v301
        %321 = vmatprep.subr.mxu0 0.0
        %322 = vmatpush1.msra.mxu0 %v302
        %323 = vmatprep.subr.mxu0 0.0
        %324 = vmatpush1.msra.mxu0 %v303
        %325 = vmatprep.subr.mxu0 0.0
        %326 = vmatpush1.msra.mxu0 %v304
        %327 = vmatprep.subr.mxu0 0.0
        %328 = vmatpush1.msra.mxu0 %v305
        %329 = vmatprep.subr.mxu0 0.0
        %330 = vmatpush1.msra.mxu0 %v306
        %331 = vmatprep.subr.mxu0 0.0
        %332 = vmatpush1.msra.mxu0 %v307
        %333 = vmatprep.subr.mxu0 0.0
        %334 = vmatpush1.msra.mxu0 %v308
        %335 = vmatprep.subr.mxu0 0.0
        %336 = vmatpush1.msra.mxu0 %v309
        %337 = vmatprep.subr.mxu0 0.0
        %338 = vmatpush1.msra.mxu0 %v310
        %339 = vmatprep.subr.mxu0 0.0
        %340 = vmatpush1.msra.mxu0 %v311
        %341 = vmatprep.subr.mxu0 0.0
        %342 = vmatpush1.msra.mxu0 %v312
        %343 = vmatprep.subr.mxu0 0.0
        %344 = vmatpush1.msra.mxu0 %v313
        %345 = vmatprep.subr.mxu0 0.0
        %346 = vmatpush1.msra.mxu0 %v314
        %347 = vmatprep.subr.mxu0 0.0
        %348 = vmatpush1.msra.mxu0 0.0
        %349 = vmatprep.subr.mxu0 0.0
        %350 = vmatpush1.msra.mxu0 0.0
        %351 = vmatprep.subr.mxu0 0.0
        %352 = vmatpush1.msra.mxu0 0.0
        %353 = vmatprep.subr.mxu0 0.0
        %354 = vmatpush1.msra.mxu0 0.0
        %355 = vmatprep.subr.mxu0 0.0
        %356 = vmatpush1.msra.mxu0 0.0
        %357 = vmatprep.subr.mxu0 0.0
        %358 = vmatpush1.msra.mxu0 0.0
        %359 = vmatprep.subr.mxu0 0.0
        %360 = vmatpush1.msra.mxu0 0.0
        %361 = vmatprep.subr.mxu0 0.0
        %362 = vmatpush1.msra.mxu0 0.0
        %363 = vmatprep.subr.mxu0 0.0
        %364 = vmatpush1.msra.mxu0 0.0
        %365 = vmatprep.subr.mxu0 0.0
        %366 = vmatpush1.msra.mxu0 0.0
        %367 = vmatprep.subr.mxu0 0.0
        %368 = vmatpush1.msra.mxu0 0.0
        %369 = vmatprep.subr.mxu0 0.0
        %370 = vmatpush1.msra.mxu0 0.0
        %371 = vmatprep.subr.mxu0 0.0
        %372 = vmatpush1.msra.mxu0 0.0
        %373 = vmatprep.subr.mxu0 0.0
        %374 = vmatpush1.msra.mxu0 0.0
        %375 = vmatprep.subr.mxu0 0.0
        %376 = vmatpush1.msra.mxu0 0.0
        %377 = vmatprep.subr.mxu0 0.0
        %378 = vmatpush1.msra.mxu0 0.0
        %379 = vmatprep.mubr.f32.mxu0 0.0
        %380 = vmatmul.mubr.f32.gmra.mrb[0].mxu0 %v272
        %v381 = vpop.f32.mrb[0].mxu0
        %v382 = vadd.f32 0.0, %v381
        %v383 = vpop.f32.mrb[0].mxu0
        %384 = vmatprep.mubr.f32.mxu0 0.0
        %385 = vmatmul.mubr.f32.gmra.mrb[0].mxu0 %v273
        %v386 = vpop.f32.mrb[0].mxu0
        %v387 = vadd.f32 0.0, %v386
        %v388 = vpop.f32.mrb[0].mxu0
        %389 = vdwg.mxu0
        %390 = vmatprep.subr.mxu0 0.0
        %391 = vmatpush1.msra.mxu0 %v282
        %392 = vmatprep.subr.mxu0 0.0
        %393 = vmatpush1.msra.mxu0 %v283
        %394 = vmatprep.subr.mxu0 0.0
        %395 = vmatpush1.msra.mxu0 %v284
        %396 = vmatprep.subr.mxu0 0.0
        %397 = vmatpush1.msra.mxu0 %v285
        %398 = vmatprep.subr.mxu0 0.0
        %399 = vmatpush1.msra.mxu0 %v286
        %400 = vmatprep.subr.mxu0 0.0
        %401 = vmatpush1.msra.mxu0 %v287
        %402 = vmatprep.subr.mxu0 0.0
        %403 = vmatpush1.msra.mxu0 %v288
        %404 = vmatprep.subr.mxu0 0.0
        %405 = vmatpush1.msra.mxu0 %v289
        %406 = vmatprep.subr.mxu0 0.0
        %407 = vmatpush1.msra.mxu0 %v290
        %408 = vmatprep.subr.mxu0 0.0
        %409 = vmatpush1.msra.mxu0 %v291
        %410 = vmatprep.subr.mxu0 0.0
        %411 = vmatpush1.msra.mxu0 %v292
        %412 = vmatprep.subr.mxu0 0.0
        %413 = vmatpush1.msra.mxu0 %v293
        %414 = vmatprep.subr.mxu0 0.0
        %415 = vmatpush1.msra.mxu0 %v294
        %416 = vmatprep.subr.mxu0 0.0
        %417 = vmatpush1.msra.mxu0 %v295
        %418 = vmatprep.subr.mxu0 0.0
        %419 = vmatpush1.msra.mxu0 %v296
        %420 = vmatprep.subr.mxu0 0.0
        %421 = vmatpush1.msra.mxu0 %v297
        %422 = vmatprep.subr.mxu0 0.0
        %423 = vmatpush1.msra.mxu0 0.0
        %424 = vmatprep.subr.mxu0 0.0
        %425 = vmatpush1.msra.mxu0 0.0
        %426 = vmatprep.subr.mxu0 0.0
        %427 = vmatpush1.msra.mxu0 0.0
        %428 = vmatprep.subr.mxu0 0.0
        %429 = vmatpush1.msra.mxu0 0.0
        %430 = vmatprep.subr.mxu0 0.0
        %431 = vmatpush1.msra.mxu0 0.0
        %432 = vmatprep.subr.mxu0 0.0
        %433 = vmatpush1.msra.mxu0 0.0
        %434 = vmatprep.subr.mxu0 0.0
        %435 = vmatpush1.msra.mxu0 0.0
        %436 = vmatprep.subr.mxu0 0.0
        %437 = vmatpush1.msra.mxu0 0.0
        %438 = vmatprep.subr.mxu0 0.0
        %439 = vmatpush1.msra.mxu0 0.0
        %440 = vmatprep.subr.mxu0 0.0
        %441 = vmatpush1.msra.mxu0 0.0
        %442 = vmatprep.subr.mxu0 0.0
        %443 = vmatpush1.msra.mxu0 0.0
        %444 = vmatprep.subr.mxu0 0.0
        %445 = vmatpush1.msra.mxu0 0.0
        %446 = vmatprep.subr.mxu0 0.0
        %447 = vmatpush1.msra.mxu0 0.0
        %448 = vmatprep.subr.mxu0 0.0
        %449 = vmatpush1.msra.mxu0 0.0
        %450 = vmatprep.subr.mxu0 0.0
        %451 = vmatpush1.msra.mxu0 0.0
        %452 = vmatprep.subr.mxu0 0.0
        %453 = vmatpush1.msra.mxu0 0.0
        %454 = vmatprep.mubr.f32.mxu0 0.0
        %455 = vmatmul.mubr.f32.gmra.mrb[0].mxu0 %v278
        %v456 = vpop.f32.mrb[0].mxu0
        %v457 = vadd.f32 %v382, %v456
        %v458 = vpop.f32.mrb[0].mxu0
        %459 = vmatprep.mubr.f32.mxu0 0.0
        %460 = vmatmul.mubr.f32.gmra.mrb[0].mxu0 %v279
        %v461 = vpop.f32.mrb[0].mxu0
        %v462 = vadd.f32 %v387, %v461
        %v463 = vpop.f32.mrb[0].mxu0
        %464 = vdwg.mxu0
        %s465 = scalar_lea.vmem [#allocation6], 256
        %v466 = vld [vmem:[%s465] sm:$0xff]
        %v467 = vld [vmem:[%s465 + $0x8] sm:$0xff]
        %v468 = vld [vmem:[%s465 + $0x10] sm:$0xff]
        %v469 = vld [vmem:[%s465 + $0x18] sm:$0xff]
        %v470 = vld [vmem:[%s465 + $0x20] sm:$0xff]
        %v471 = vld [vmem:[%s465 + $0x28] sm:$0xff]
        %v472 = vld [vmem:[%s465 + $0x30] sm:$0xff]
        %v473 = vld [vmem:[%s465 + $0x38] sm:$0xff]
        %v474 = vld [vmem:[%s465 + $0x40] sm:$0xff]
        %v475 = vld [vmem:[%s465 + $0x48] sm:$0xff]
        %v476 = vld [vmem:[%s465 + $0x50] sm:$0xff]
        %v477 = vld [vmem:[%s465 + $0x58] sm:$0xff]
        %v478 = vld [vmem:[%s465 + $0x60] sm:$0xff]
        %v479 = vld [vmem:[%s465 + $0x68] sm:$0xff]
        %v480 = vld [vmem:[%s465 + $0x70] sm:$0xff]
        %v481 = vld [vmem:[%s465 + $0x78] sm:$0xff]
        %482 = vmatprep.subr.mxu0 0.0
        %483 = vmatpush1.msra.mxu0 %v466
        %484 = vmatprep.subr.mxu0 0.0
        %485 = vmatpush1.msra.mxu0 %v467
        %486 = vmatprep.subr.mxu0 0.0
        %487 = vmatpush1.msra.mxu0 %v468
        %488 = vmatprep.subr.mxu0 0.0
        %489 = vmatpush1.msra.mxu0 %v469
        %490 = vmatprep.subr.mxu0 0.0
        %491 = vmatpush1.msra.mxu0 %v470
        %492 = vmatprep.subr.mxu0 0.0
        %493 = vmatpush1.msra.mxu0 %v471
        %494 = vmatprep.subr.mxu0 0.0
        %495 = vmatpush1.msra.mxu0 %v472
        %496 = vmatprep.subr.mxu0 0.0
        %497 = vmatpush1.msra.mxu0 %v473
        %498 = vmatprep.subr.mxu0 0.0
        %499 = vmatpush1.msra.mxu0 %v474
        %500 = vmatprep.subr.mxu0 0.0
        %501 = vmatpush1.msra.mxu0 %v475
        %502 = vmatprep.subr.mxu0 0.0
        %503 = vmatpush1.msra.mxu0 %v476
        %504 = vmatprep.subr.mxu0 0.0
        %505 = vmatpush1.msra.mxu0 %v477
        %506 = vmatprep.subr.mxu0 0.0
        %507 = vmatpush1.msra.mxu0 %v478
        %508 = vmatprep.subr.mxu0 0.0
        %509 = vmatpush1.msra.mxu0 %v479
        %510 = vmatprep.subr.mxu0 0.0
        %511 = vmatpush1.msra.mxu0 %v480
        %512 = vmatprep.subr.mxu0 0.0
        %513 = vmatpush1.msra.mxu0 %v481
        %514 = vmatprep.subr.mxu0 0.0
        %515 = vmatpush1.msra.mxu0 0.0
        %516 = vmatprep.subr.mxu0 0.0
        %517 = vmatpush1.msra.mxu0 0.0
        %518 = vmatprep.subr.mxu0 0.0
        %519 = vmatpush1.msra.mxu0 0.0
        %520 = vmatprep.subr.mxu0 0.0
        %521 = vmatpush1.msra.mxu0 0.0
        %522 = vmatprep.subr.mxu0 0.0
        %523 = vmatpush1.msra.mxu0 0.0
        %524 = vmatprep.subr.mxu0 0.0
        %525 = vmatpush1.msra.mxu0 0.0
        %526 = vmatprep.subr.mxu0 0.0
        %527 = vmatpush1.msra.mxu0 0.0
        %528 = vmatprep.subr.mxu0 0.0
        %529 = vmatpush1.msra.mxu0 0.0
        %530 = vmatprep.subr.mxu0 0.0
        %531 = vmatpush1.msra.mxu0 0.0
        %532 = vmatprep.subr.mxu0 0.0
        %533 = vmatpush1.msra.mxu0 0.0
        %534 = vmatprep.subr.mxu0 0.0
        %535 = vmatpush1.msra.mxu0 0.0
        %536 = vmatprep.subr.mxu0 0.0
        %537 = vmatpush1.msra.mxu0 0.0
        %538 = vmatprep.subr.mxu0 0.0
        %539 = vmatpush1.msra.mxu0 0.0
        %540 = vmatprep.subr.mxu0 0.0
        %541 = vmatpush1.msra.mxu0 0.0
        %542 = vmatprep.subr.mxu0 0.0
        %543 = vmatpush1.msra.mxu0 0.0
        %544 = vmatprep.subr.mxu0 0.0
        %545 = vmatpush1.msra.mxu0 0.0
        %546 = vmatprep.mubr.f32.mxu0 0.0
        %547 = vmatmul.mubr.f32.gmra.mrb[0].mxu0 %v280
        %v548 = vpop.f32.mrb[0].mxu0
        %v549 = vadd.f32 0.0, %v548
        %v550 = vpop.f32.mrb[0].mxu0
        %551 = vmatprep.mubr.f32.mxu0 0.0
        %552 = vmatmul.mubr.f32.gmra.mrb[0].mxu0 %v281
        %v553 = vpop.f32.mrb[0].mxu0
        %v554 = vadd.f32 0.0, %v553
        %v555 = vpop.f32.mrb[0].mxu0
        %556 = vdwg.mxu0
        %v557 = vadd.f32 %v457, %v549
        %v558 = vadd.f32 %v462, %v554
        %v559 = vld [vmem:[%s2] sm:$0x1]
        %v561 = vlaneseq
        %v562 = vshrl.u32 %v561, 7
        %v563 = vsub.s32 0, %v562
        %v564 = vrot.slane %v559, %v563
        %v566 = vadd.f32 %v557, %v564
        %v567 = vadd.f32 %v558, %v564
        %v568 = vmax.f32 %v566, 0.0
        %v569 = vmax.f32 %v567, 0.0
        %570 = vst [vmem:[#allocation2 + $0x8] sm:$0xff] %v568
        %571 = vst [vmem:[#allocation2 + $0x10] sm:$0xff] %v569
        %v572 = vld [vmem:[#allocation2 + $0x7] sm:$0xff]
        %v573 = vld [vmem:[#allocation2 + $0xf] sm:$0xff]
        %v574 = vld [vmem:[#allocation2 + $0x9] sm:$0xff]
        %v575 = vld [vmem:[#allocation2 + $0x11] sm:$0xff]
        %v576 = vld [vmem:[#allocation8] sm:$0xff]
        %v577 = vld [vmem:[#allocation8 + $0x8] sm:$0xff]
        %v578 = vld [vmem:[#allocation8 + $0x10] sm:$0xff]
        %v579 = vld [vmem:[#allocation8 + $0x18] sm:$0xff]
        %v580 = vld [vmem:[#allocation8 + $0x20] sm:$0xff]
        %v581 = vld [vmem:[#allocation8 + $0x28] sm:$0xff]
        %v582 = vld [vmem:[#allocation8 + $0x30] sm:$0xff]
        %v583 = vld [vmem:[#allocation8 + $0x38] sm:$0xff]
        %v584 = vld [vmem:[#allocation8 + $0x40] sm:$0xff]
        %v585 = vld [vmem:[#allocation8 + $0x48] sm:$0xff]
        %v586 = vld [vmem:[#allocation8 + $0x50] sm:$0xff]
        %v587 = vld [vmem:[#allocation8 + $0x58] sm:$0xff]
        %v588 = vld [vmem:[#allocation8 + $0x60] sm:$0xff]
        %v589 = vld [vmem:[#allocation8 + $0x68] sm:$0xff]
        %v590 = vld [vmem:[#allocation8 + $0x70] sm:$0xff]
        %v591 = vld [vmem:[#allocation8 + $0x78] sm:$0xff]
        %s592 = scalar_lea.vmem [#allocation8], 128
        %v593 = vld [vmem:[%s592] sm:$0xff]
        %v594 = vld [vmem:[%s592 + $0x8] sm:$0xff]
        %v595 = vld [vmem:[%s592 + $0x10] sm:$0xff]
        %v596 = vld [vmem:[%s592 + $0x18] sm:$0xff]
        %v597 = vld [vmem:[%s592 + $0x20] sm:$0xff]
        %v598 = vld [vmem:[%s592 + $0x28] sm:$0xff]
        %v599 = vld [vmem:[%s592 + $0x30] sm:$0xff]
        %v600 = vld [vmem:[%s592 + $0x38] sm:$0xff]
        %v601 = vld [vmem:[%s592 + $0x40] sm:$0xff]
        %v602 = vld [vmem:[%s592 + $0x48] sm:$0xff]
        %v603 = vld [vmem:[%s592 + $0x50] sm:$0xff]
        %v604 = vld [vmem:[%s592 + $0x58] sm:$0xff]
        %v605 = vld [vmem:[%s592 + $0x60] sm:$0xff]
        %v606 = vld [vmem:[%s592 + $0x68] sm:$0xff]
        %v607 = vld [vmem:[%s592 + $0x70] sm:$0xff]
        %v608 = vld [vmem:[%s592 + $0x78] sm:$0xff]
        %609 = vmatprep.subr.mxu0 0.0
        %610 = vmatpush1.msra.mxu0 %v593
        %611 = vmatprep.subr.mxu0 0.0
        %612 = vmatpush1.msra.mxu0 %v594
        %613 = vmatprep.subr.mxu0 0.0
        %614 = vmatpush1.msra.mxu0 %v595
        %615 = vmatprep.subr.mxu0 0.0
        %616 = vmatpush1.msra.mxu0 %v596
        %617 = vmatprep.subr.mxu0 0.0
        %618 = vmatpush1.msra.mxu0 %v597
        %619 = vmatprep.subr.mxu0 0.0
        %620 = vmatpush1.msra.mxu0 %v598
        %621 = vmatprep.subr.mxu0 0.0
        %622 = vmatpush1.msra.mxu0 %v599
        %623 = vmatprep.subr.mxu0 0.0
        %624 = vmatpush1.msra.mxu0 %v600
        %625 = vmatprep.subr.mxu0 0.0
        %626 = vmatpush1.msra.mxu0 %v601
        %627 = vmatprep.subr.mxu0 0.0
        %628 = vmatpush1.msra.mxu0 %v602
        %629 = vmatprep.subr.mxu0 0.0
        %630 = vmatpush1.msra.mxu0 %v603
        %631 = vmatprep.subr.mxu0 0.0
        %632 = vmatpush1.msra.mxu0 %v604
        %633 = vmatprep.subr.mxu0 0.0
        %634 = vmatpush1.msra.mxu0 %v605
        %635 = vmatprep.subr.mxu0 0.0
        %636 = vmatpush1.msra.mxu0 %v606
        %637 = vmatprep.subr.mxu0 0.0
        %638 = vmatpush1.msra.mxu0 %v607
        %639 = vmatprep.subr.mxu0 0.0
        %640 = vmatpush1.msra.mxu0 %v608
        %641 = vmatprep.subr.mxu0 0.0
        %642 = vmatpush1.msra.mxu0 0.0
        %643 = vmatprep.subr.mxu0 0.0
        %644 = vmatpush1.msra.mxu0 0.0
        %645 = vmatprep.subr.mxu0 0.0
        %646 = vmatpush1.msra.mxu0 0.0
        %647 = vmatprep.subr.mxu0 0.0
        %648 = vmatpush1.msra.mxu0 0.0
        %649 = vmatprep.subr.mxu0 0.0
        %650 = vmatpush1.msra.mxu0 0.0
        %651 = vmatprep.subr.mxu0 0.0
        %652 = vmatpush1.msra.mxu0 0.0
        %653 = vmatprep.subr.mxu0 0.0
        %654 = vmatpush1.msra.mxu0 0.0
        %655 = vmatprep.subr.mxu0 0.0
        %656 = vmatpush1.msra.mxu0 0.0
        %657 = vmatprep.subr.mxu0 0.0
        %658 = vmatpush1.msra.mxu0 0.0
        %659 = vmatprep.subr.mxu0 0.0
        %660 = vmatpush1.msra.mxu0 0.0
        %661 = vmatprep.subr.mxu0 0.0
        %662 = vmatpush1.msra.mxu0 0.0
        %663 = vmatprep.subr.mxu0 0.0
        %664 = vmatpush1.msra.mxu0 0.0
        %665 = vmatprep.subr.mxu0 0.0
        %666 = vmatpush1.msra.mxu0 0.0
        %667 = vmatprep.subr.mxu0 0.0
        %668 = vmatpush1.msra.mxu0 0.0
        %669 = vmatprep.subr.mxu0 0.0
        %670 = vmatpush1.msra.mxu0 0.0
        %671 = vmatprep.subr.mxu0 0.0
        %672 = vmatpush1.msra.mxu0 0.0
        %673 = vmatprep.mubr.f32.mxu0 0.0
        %674 = vmatmul.mubr.f32.gmra.mrb[0].mxu0 %v568
        %v675 = vpop.f32.mrb[0].mxu0
        %v676 = vadd.f32 0.0, %v675
        %v677 = vpop.f32.mrb[0].mxu0
        %678 = vmatprep.mubr.f32.mxu0 0.0
        %679 = vmatmul.mubr.f32.gmra.mrb[0].mxu0 %v569
        %v680 = vpop.f32.mrb[0].mxu0
        %v681 = vadd.f32 0.0, %v680
        %v682 = vpop.f32.mrb[0].mxu0
        %683 = vdwg.mxu0
        %684 = vmatprep.subr.mxu0 0.0
        %685 = vmatpush1.msra.mxu0 %v576
        %686 = vmatprep.subr.mxu0 0.0
        %687 = vmatpush1.msra.mxu0 %v577
        %688 = vmatprep.subr.mxu0 0.0
        %689 = vmatpush1.msra.mxu0 %v578
        %690 = vmatprep.subr.mxu0 0.0
        %691 = vmatpush1.msra.mxu0 %v579
        %692 = vmatprep.subr.mxu0 0.0
        %693 = vmatpush1.msra.mxu0 %v580
        %694 = vmatprep.subr.mxu0 0.0
        %695 = vmatpush1.msra.mxu0 %v581
        %696 = vmatprep.subr.mxu0 0.0
        %697 = vmatpush1.msra.mxu0 %v582
        %698 = vmatprep.subr.mxu0 0.0
        %699 = vmatpush1.msra.mxu0 %v583
        %700 = vmatprep.subr.mxu0 0.0
        %701 = vmatpush1.msra.mxu0 %v584
        %702 = vmatprep.subr.mxu0 0.0
        %703 = vmatpush1.msra.mxu0 %v585
        %704 = vmatprep.subr.mxu0 0.0
        %705 = vmatpush1.msra.mxu0 %v586
        %706 = vmatprep.subr.mxu0 0.0
        %707 = vmatpush1.msra.mxu0 %v587
        %708 = vmatprep.subr.mxu0 0.0
        %709 = vmatpush1.msra.mxu0 %v588
        %710 = vmatprep.subr.mxu0 0.0
        %711 = vmatpush1.msra.mxu0 %v589
        %712 = vmatprep.subr.mxu0 0.0
        %713 = vmatpush1.msra.mxu0 %v590
        %714 = vmatprep.subr.mxu0 0.0
        %715 = vmatpush1.msra.mxu0 %v591
        %716 = vmatprep.subr.mxu0 0.0
        %717 = vmatpush1.msra.mxu0 0.0
        %718 = vmatprep.subr.mxu0 0.0
        %719 = vmatpush1.msra.mxu0 0.0
        %720 = vmatprep.subr.mxu0 0.0
        %721 = vmatpush1.msra.mxu0 0.0
        %722 = vmatprep.subr.mxu0 0.0
        %723 = vmatpush1.msra.mxu0 0.0
        %724 = vmatprep.subr.mxu0 0.0
        %725 = vmatpush1.msra.mxu0 0.0
        %726 = vmatprep.subr.mxu0 0.0
        %727 = vmatpush1.msra.mxu0 0.0
        %728 = vmatprep.subr.mxu0 0.0
        %729 = vmatpush1.msra.mxu0 0.0
        %730 = vmatprep.subr.mxu0 0.0
        %731 = vmatpush1.msra.mxu0 0.0
        %732 = vmatprep.subr.mxu0 0.0
        %733 = vmatpush1.msra.mxu0 0.0
        %734 = vmatprep.subr.mxu0 0.0
        %735 = vmatpush1.msra.mxu0 0.0
        %736 = vmatprep.subr.mxu0 0.0
        %737 = vmatpush1.msra.mxu0 0.0
        %738 = vmatprep.subr.mxu0 0.0
        %739 = vmatpush1.msra.mxu0 0.0
        %740 = vmatprep.subr.mxu0 0.0
        %741 = vmatpush1.msra.mxu0 0.0
        %742 = vmatprep.subr.mxu0 0.0
        %743 = vmatpush1.msra.mxu0 0.0
        %744 = vmatprep.subr.mxu0 0.0
        %745 = vmatpush1.msra.mxu0 0.0
        %746 = vmatprep.subr.mxu0 0.0
        %747 = vmatpush1.msra.mxu0 0.0
        %748 = vmatprep.mubr.f32.mxu0 0.0
        %749 = vmatmul.mubr.f32.gmra.mrb[0].mxu0 %v572
        %v750 = vpop.f32.mrb[0].mxu0
        %v751 = vadd.f32 %v676, %v750
        %v752 = vpop.f32.mrb[0].mxu0
        %753 = vmatprep.mubr.f32.mxu0 0.0
        %754 = vmatmul.mubr.f32.gmra.mrb[0].mxu0 %v573
        %v755 = vpop.f32.mrb[0].mxu0
        %v756 = vadd.f32 %v681, %v755
        %v757 = vpop.f32.mrb[0].mxu0
        %758 = vdwg.mxu0
        %s759 = scalar_lea.vmem [#allocation8], 256
        %v760 = vld [vmem:[%s759] sm:$0xff]
        %v761 = vld [vmem:[%s759 + $0x8] sm:$0xff]
        %v762 = vld [vmem:[%s759 + $0x10] sm:$0xff]
        %v763 = vld [vmem:[%s759 + $0x18] sm:$0xff]
        %v764 = vld [vmem:[%s759 + $0x20] sm:$0xff]
        %v765 = vld [vmem:[%s759 + $0x28] sm:$0xff]
        %v766 = vld [vmem:[%s759 + $0x30] sm:$0xff]
        %v767 = vld [vmem:[%s759 + $0x38] sm:$0xff]
        %v768 = vld [vmem:[%s759 + $0x40] sm:$0xff]
        %v769 = vld [vmem:[%s759 + $0x48] sm:$0xff]
        %v770 = vld [vmem:[%s759 + $0x50] sm:$0xff]
        %v771 = vld [vmem:[%s759 + $0x58] sm:$0xff]
        %v772 = vld [vmem:[%s759 + $0x60] sm:$0xff]
        %v773 = vld [vmem:[%s759 + $0x68] sm:$0xff]
        %v774 = vld [vmem:[%s759 + $0x70] sm:$0xff]
        %v775 = vld [vmem:[%s759 + $0x78] sm:$0xff]
        %776 = vmatprep.subr.mxu0 0.0
        %777 = vmatpush1.msra.mxu0 %v760
        %778 = vmatprep.subr.mxu0 0.0
        %779 = vmatpush1.msra.mxu0 %v761
        %780 = vmatprep.subr.mxu0 0.0
        %781 = vmatpush1.msra.mxu0 %v762
        %782 = vmatprep.subr.mxu0 0.0
        %783 = vmatpush1.msra.mxu0 %v763
        %784 = vmatprep.subr.mxu0 0.0
        %785 = vmatpush1.msra.mxu0 %v764
        %786 = vmatprep.subr.mxu0 0.0
        %787 = vmatpush1.msra.mxu0 %v765
        %788 = vmatprep.subr.mxu0 0.0
        %789 = vmatpush1.msra.mxu0 %v766
        %790 = vmatprep.subr.mxu0 0.0
        %791 = vmatpush1.msra.mxu0 %v767
        %792 = vmatprep.subr.mxu0 0.0
        %793 = vmatpush1.msra.mxu0 %v768
        %794 = vmatprep.subr.mxu0 0.0
        %795 = vmatpush1.msra.mxu0 %v769
        %796 = vmatprep.subr.mxu0 0.0
        %797 = vmatpush1.msra.mxu0 %v770
        %798 = vmatprep.subr.mxu0 0.0
        %799 = vmatpush1.msra.mxu0 %v771
        %800 = vmatprep.subr.mxu0 0.0
        %801 = vmatpush1.msra.mxu0 %v772
        %802 = vmatprep.subr.mxu0 0.0
        %803 = vmatpush1.msra.mxu0 %v773
        %804 = vmatprep.subr.mxu0 0.0
        %805 = vmatpush1.msra.mxu0 %v774
        %806 = vmatprep.subr.mxu0 0.0
        %807 = vmatpush1.msra.mxu0 %v775
        %808 = vmatprep.subr.mxu0 0.0
        %809 = vmatpush1.msra.mxu0 0.0
        %810 = vmatprep.subr.mxu0 0.0
        %811 = vmatpush1.msra.mxu0 0.0
        %812 = vmatprep.subr.mxu0 0.0
        %813 = vmatpush1.msra.mxu0 0.0
        %814 = vmatprep.subr.mxu0 0.0
        %815 = vmatpush1.msra.mxu0 0.0
        %816 = vmatprep.subr.mxu0 0.0
        %817 = vmatpush1.msra.mxu0 0.0
        %818 = vmatprep.subr.mxu0 0.0
        %819 = vmatpush1.msra.mxu0 0.0
        %820 = vmatprep.subr.mxu0 0.0
        %821 = vmatpush1.msra.mxu0 0.0
        %822 = vmatprep.subr.mxu0 0.0
        %823 = vmatpush1.msra.mxu0 0.0
        %824 = vmatprep.subr.mxu0 0.0
        %825 = vmatpush1.msra.mxu0 0.0
        %826 = vmatprep.subr.mxu0 0.0
        %827 = vmatpush1.msra.mxu0 0.0
        %828 = vmatprep.subr.mxu0 0.0
        %829 = vmatpush1.msra.mxu0 0.0
        %830 = vmatprep.subr.mxu0 0.0
        %831 = vmatpush1.msra.mxu0 0.0
        %832 = vmatprep.subr.mxu0 0.0
        %833 = vmatpush1.msra.mxu0 0.0
        %834 = vmatprep.subr.mxu0 0.0
        %835 = vmatpush1.msra.mxu0 0.0
        %836 = vmatprep.subr.mxu0 0.0
        %837 = vmatpush1.msra.mxu0 0.0
        %838 = vmatprep.subr.mxu0 0.0
        %839 = vmatpush1.msra.mxu0 0.0
        %840 = vmatprep.mubr.f32.mxu0 0.0
        %841 = vmatmul.mubr.f32.gmra.mrb[0].mxu0 %v574
        %v842 = vpop.f32.mrb[0].mxu0
        %v843 = vadd.f32 0.0, %v842
        %v844 = vpop.f32.mrb[0].mxu0
        %845 = vmatprep.mubr.f32.mxu0 0.0
        %846 = vmatmul.mubr.f32.gmra.mrb[0].mxu0 %v575
        %v847 = vpop.f32.mrb[0].mxu0
        %v848 = vadd.f32 0.0, %v847
        %v849 = vpop.f32.mrb[0].mxu0
        %850 = vdwg.mxu0
        %v851 = vadd.f32 %v751, %v843
        %v852 = vadd.f32 %v756, %v848
        %v853 = vld [vmem:[%s4] sm:$0x1]
        %v855 = vlaneseq
        %v856 = vshrl.u32 %v855, 7
        %v857 = vsub.s32 0, %v856
        %v858 = vrot.slane %v853, %v857
        %v860 = vadd.f32 %v851, %v858
        %v861 = vadd.f32 %v852, %v858
        %v862 = vadd.f32 %v860, %v272
        %v863 = vadd.f32 %v861, %v273
        %v864 = vmax.f32 %v862, 0.0
        %v865 = vmax.f32 %v863, 0.0
        %866 = vst [vmem:[%s271] sm:$0xff] %v864
        %867 = vst [vmem:[%s271 + $0x8] sm:$0xff] %v865
        %s868 = sand.u32 %s141, 1
        %s869 = scalar_lea.sflag [#allocation5], %s868
        %s870 = sand.u32 %s141, 1
        %s871 = smul.addr %s870, 16
        %s872 = scalar_lea.vmem [#allocation9], %s871
        // Predicated region
        $region53: #{tpu_custom_call.1} parent=39 // pred_check
          %p873 = pneg %p151
        $region54: #{tpu_custom_call.1} parent=39 // pred_check_branch
          %875 = sbr.rel (%p873) target = $region56
        $region55: #{tpu_custom_call.1} parent=39 // pred_region
          %s877 = ssub.s32 256, 256
          %878 = vsyncadd %s869, %s877
          %s879 = smul.addr %s23, 2
          %s880 = smul.addr %s879, 128
          %s881 = scalar_lea.hbm %s5, %s880
          %s882 = sshll.u32 %s872, 4
          %s883 = int_to_ptr.vmem [resolvable:$true] %s882
          %888 = dma.vmem_to_hbm [thread:$0]  %s883, 256, %s881, %s869, 128, 128, 8
        $region56: #{tpu_custom_call.1} parent=39 // pred_fallthru
          _
      $region40: #{tpu_custom_call.1} parent=5 // pred_fallthru
        _
      %p889 = scmp.le.s32.totalorder 2, %s18
      // Predicated region
      $region57: #{tpu_custom_call.1} parent=5 // pred_check
        %p890 = pneg %p889
      $region58: #{tpu_custom_call.1} parent=5 // pred_check_branch
        %892 = sbr.rel (%p890) target = $region60
      $region59: #{tpu_custom_call.1} parent=5 // pred_region
        %s893 = ssub.s32 %s18, 2
        // Predicated region
        $region61: #{tpu_custom_call.1} parent=59 // pred_check
          %p894 = pneg %p157
        $region62: #{tpu_custom_call.1} parent=59 // pred_check_branch
          %896 = sbr.rel (%p894) target = $region64
        $region63: #{tpu_custom_call.1} parent=59 // pred_region
          %s897 = sand.u32 %s142, 1
          %s898 = scalar_lea.sflag [#allocation5], %s897
          %s899 = sand.u32 %s142, 1
          %s900 = smul.addr %s899, 16
          %s901 = scalar_lea.vmem [#allocation9], %s900
          %902 = dma.done %s898, 256
        $region64: #{tpu_custom_call.1} parent=59 // pred_fallthru
          _
      $region60: #{tpu_custom_call.1} parent=5 // pred_fallthru
        _
    $region6: #{tpu_custom_call.1} parent=1 // loop_footer
      %s22 = sadd.s32 1, %s18
    $region7: #{tpu_custom_call.1} parent=1 // loop_footer_branch
      %17 = sbr.rel target = $region3
    $region8: #{tpu_custom_call.1} parent=1 // loop_exit
      _
    %903 = vsyncpa [#allocation4], 1
    %s904 = scalar_lea.sflag [#allocation4], 1
    %905 = vsyncpa %s904, 1
    %906 = vsyncpa [#allocation7], 1
    %907 = vsyncpa [#allocation5], 1
    %s908 = scalar_lea.sflag [#allocation5], 1
    %909 = vsyncpa %s908, 1

</llo_original>
